<compile_context>
chip_gen: v5e
topology: v5e:2x2
jax: 0.10.0
libtpu: 0.0.40
codegen_flags: <defaults>
</compile_context>

<pallas_src>
import functools

import jax
import jax.numpy as jnp
from jax.experimental import pallas as pl
from jax.experimental.pallas import tpu as pltpu

IDENTITY = "identity"
RELU = "relu"
SIGMOID = "sigmoid"
TANH = "tanh"
_SUPPORTED = (IDENTITY, RELU, SIGMOID, TANH)

_LANE = 128       # lane width: last dim of every block padded to this
_SUBLANE = 8      # f32 sublane granularity for the batch tile
_MAX_TILE_B = 512


def _round_up(n, m):
    return ((n + m - 1) // m) * m


def _cdiv(a, b):
    return (a + b - 1) // b


def _apply_act(y, act):
    if act == RELU:
        return jnp.maximum(y, 0.0)
    if act == SIGMOID:
        return jax.nn.sigmoid(y)
    if act == TANH:
        return jnp.tanh(y)
    return y  # identity


def _vmem_capacity_bytes():
    """Per-core VMEM capacity; conservative fallback if the query fails."""
    try:
        cap = int(getattr(pltpu.get_tpu_info(), "vmem_capacity_bytes", 0))
        if cap > 0:
            return cap
    except Exception:
        pass
    return 64 * 1024 * 1024   # v7x per-TC value (smallest of v5e/v6e/v7x)


def _resident_spec(shape):
    """BlockSpec for a parameter that stays VMEM-resident across the grid.

    Constant index_map -> fetched once; Buffered(1) drops the unused second
    pipeline buffer and halves the parameter VMEM footprint.
    """
    try:
        return pl.BlockSpec(shape, lambda i: (0, 0),
                            pipeline_mode=pl.Buffered(1))
    except TypeError:
        # Older jax without pipeline_mode on BlockSpec: fall back gracefully.
        return pl.BlockSpec(shape, lambda i: (0, 0))


def _make_mlp_kernel(acts, carry_dtype):
    """Fused kernel: runs every layer of the MLP on one batch tile.

    Ref layout: (x_ref, w_0, b_0, w_1, b_1, ..., w_{L-1}, b_{L-1}, o_ref)
      x_ref : [TILE_B, D0_pad]
      w_l   : [Din_pad_l, Dout_pad_l]   (already transposed + zero padded)
      b_l   : [1, Dout_pad_l]           (f32, zero padded)
      o_ref : [TILE_B, DL_pad]
    """
    n_layers = len(acts)

    def kernel(x_ref, *refs):
        o_ref = refs[-1]
        x = x_ref[...]
        for l in range(n_layers):              # static -> fully unrolled
            w = refs[2 * l][...]
            b = refs[2 * l + 1][...]
            # MXU matmul in the param dtype, f32 accumulation.
            y = jnp.dot(x.astype(w.dtype), w,
                        preferred_element_type=jnp.float32)
            y = y + b.astype(jnp.float32)      # [1, Dout] broadcast over rows
            y = _apply_act(y, acts[l])         # elementwise in f32 (VPU/EUP)
            # Carry inter-layer activations in the (possibly bf16) dtype to
            # halve vreg/VMEM pressure of the [TILE_B, hidden_pad] temporary.
            x = y if l == n_layers - 1 else y.astype(carry_dtype)
        o_ref[...] = x.astype(o_ref.dtype)

    return kernel


def mlp_apply(x, flat_params, *, acts, out_dim):
    """Forward pass: pad, run the fused Pallas kernel, strip padding.

    x            : [B, D0]  float32
    flat_params  : [w_t_0, b_0, w_t_1, b_1, ...]  (padded, transposed)
    """
    B, din = x.shape
    weights = flat_params[0::2]
    din_pad = weights[0].shape[0]
    dout_pad = weights[-1].shape[1]
    max_width_pad = max(max(w.shape[0], w.shape[1]) for w in weights)
    carry_dtype = weights[0].dtype

    x_itemsize = jnp.dtype(x.dtype).itemsize
    carry_itemsize = jnp.dtype(carry_dtype).itemsize

    # ---- VMEM-budget-driven batch-tile sizing --------------------------
    vmem_cap = _vmem_capacity_bytes()
    budget = int(vmem_cap * 0.8)                       # ~20% headroom
    param_bytes = sum(int(p.size) * jnp.dtype(p.dtype).itemsize
                      for p in flat_params)            # single-buffered now

    # Per-batch-row VMEM cost: double-buffered x & out tiles + the f32 matmul
    # result and carried activation of the widest layer.
    per_row = (2 * din_pad * x_itemsize
               + 2 * dout_pad * x_itemsize
               + max_width_pad * 4
               + max_width_pad * carry_itemsize)
    rows_fit = max((budget - param_bytes) // max(per_row, 1), _SUBLANE)
    tile_cap = int(min(_MAX_TILE_B,
                       max(_SUBLANE, (rows_fit // _SUBLANE) * _SUBLANE)))

    # Tight batch tiling: tiles divide the padded batch exactly (no ~2x
    # rounding blow-up), and when the batch permits we use >=2 grid steps so
    # the "parallel" grid axis gives v7x's second TensorCore work.
    num_tiles = _cdiv(B, tile_cap)
    if B >= 2 * _SUBLANE:
        num_tiles = max(num_tiles, 2)
    tile_b = _round_up(_cdiv(B, num_tiles), _SUBLANE)
    b_pad = tile_b * num_tiles

    x_pad = jnp.pad(x, ((0, b_pad - B), (0, din_pad - din)))

    # Explicit scoped-VMEM limit: defaults (16/32 MiB) are far below physical.
    vmem_limit = int(1.25 * (param_bytes + tile_b * per_row)) + (1 << 20)
    vmem_limit = min(max(vmem_limit, 32 * 1024 * 1024), vmem_cap)

    # Advisory cost estimate for XLA scheduling around the custom call.
    flops = 2 * b_pad * sum(w.shape[0] * w.shape[1] for w in weights)
    transcendentals = b_pad * sum(w.shape[1] for w, a in zip(weights, acts)
                                  if a in (SIGMOID, TANH))
    bytes_accessed = (int(x_pad.size) * x_itemsize + param_bytes
                      + b_pad * dout_pad * x_itemsize)
    cost = pl.CostEstimate(flops=flops, transcendentals=transcendentals,
                           bytes_accessed=bytes_accessed)

    # x / out are batch-tiled; weights & biases stay resident (block (0,0)).
    in_specs = [pl.BlockSpec((tile_b, din_pad), lambda i: (i, 0))]
    for p in flat_params:
        in_specs.append(_resident_spec(p.shape))

    out = pl.pallas_call(
        _make_mlp_kernel(acts, carry_dtype),
        out_shape=jax.ShapeDtypeStruct((b_pad, dout_pad), x.dtype),
        grid=(num_tiles,),
        in_specs=in_specs,
        out_specs=pl.BlockSpec((tile_b, dout_pad), lambda i: (i, 0)),
        compiler_params=pltpu.CompilerParams(
            dimension_semantics=("parallel",),
            vmem_limit_bytes=int(vmem_limit)),
        cost_estimate=cost,
    )(x_pad, *flat_params)

    # TODO(synk): for layer widths where tile_b x hidden_pad f32 temporaries
    # exceed the vreg budget, add an in-layer N/K tiling loop with a VMEM f32
    # accumulator instead of relying on the unrolled full-width matmul.
    return out[:B, :out_dim]


class NetPallas:
    """Mirror of the PyTorch Net module (forward pass only)."""

    def __init__(self, sl, activation, key, param_dtype=jnp.bfloat16):
        if len(sl) != len(activation) + 1:
            raise ValueError(
                "The number of layer and the activation function doesn't "
                "match! (layer = activation + 1)  layers={}, acts={}".format(
                    len(sl), len(activation)))

        self.out_dim = int(sl[-1])
        self.acts = []
        self.params = []        # unpadded (W [out,in], b [out]) for reference
        self.flat_params = []   # padded, transposed kernel operands

        for i in range(len(sl) - 1):
            from_dim, to_dim = int(sl[i]), int(sl[i + 1])
            act = activation[i]
            if act not in _SUPPORTED:
                raise ValueError(
                    "activation function not supported! Supported: {}, got {} "
                    "on layer {}".format(_SUPPORTED, act, i + 1))
            key, kw, kb = jax.random.split(key, 3)
            # Deterministic init mimicking nn.Linear's U(-1/sqrt(in), 1/sqrt(in))
            bound = 1.0 / jnp.sqrt(jnp.float32(from_dim))
            w = jax.random.uniform(kw, (to_dim, from_dim), jnp.float32,
                                   minval=-bound, maxval=bound)
            b = jax.random.uniform(kb, (to_dim,), jnp.float32,
                                   minval=-bound, maxval=bound)
            self.params.append((w, b))
            self.acts.append(act)

            # Hoisted out of the jit: transpose + lane pad to 128, done once.
            din_pad = _round_up(from_dim, _LANE)
            dout_pad = _round_up(to_dim, _LANE)
            w_t = jnp.pad(w.T, ((0, din_pad - from_dim),
                                (0, dout_pad - to_dim))).astype(param_dtype)
            b2 = jnp.pad(b.reshape(1, to_dim),
                         ((0, 0), (0, dout_pad - to_dim))).astype(jnp.float32)
            self.flat_params.append(w_t)
            self.flat_params.append(b2)

        self._fwd = jax.jit(functools.partial(
            mlp_apply, acts=tuple(self.acts), out_dim=self.out_dim))

    def __call__(self, x):
        return self._fwd(x, self.flat_params)


def _reference(x, params, acts):
    ref = x
    for (w, b), act in zip(params, acts):
        ref = ref @ w.T + b
        if act == RELU:
            ref = jnp.maximum(ref, 0.0)
        elif act == SIGMOID:
            ref = jax.nn.sigmoid(ref)
        elif act == TANH:
            ref = jnp.tanh(ref)
    return ref


if __name__ == "__main__":
    # Small deterministic example: 3-layer MLP, batch=8
    sl = [32, 64, 48, 16]                      # feature sizes per layer
    activation = [RELU, TANH, SIGMOID]         # one per Linear layer
    key = jax.random.PRNGKey(0)
    key, kx, knet = jax.random.split(key, 3)
    x = jax.random.normal(kx, (8, sl[0]), jnp.float32)

    # f32-parameter net: tight numerical check against the plain-JAX reference.
    net_f32 = NetPallas(sl, activation, knet, param_dtype=jnp.float32)
    out_f32 = net_f32(x)
    jax.block_until_ready(out_f32)
    ref = _reference(x, net_f32.params, net_f32.acts)
    assert out_f32.shape == (8, sl[-1])
    assert jnp.allclose(out_f32, ref, atol=1e-5, rtol=1e-5)

    # Default bf16-parameter net (native MXU rate on v6e/v7x): looser check.
    net_bf16 = NetPallas(sl, activation, knet)
    out_bf16 = net_bf16(x)
    jax.block_until_ready(out_bf16)
    ref16 = _reference(x, net_bf16.params, net_bf16.acts)
    assert out_bf16.shape == (8, sl[-1])
    assert jnp.allclose(out_bf16, ref16, atol=5e-2, rtol=5e-2)

    print("KERNEL_OK")
</pallas_src>

<mosaic_0001>
module attributes {stable_mosaic.version = 11 : i64} {
  func.func @kernel(%arg0: i32, %arg1: memref<8x128xf32, #tpu.memory_space<vmem>>, %arg2: memref<128x128xf32, #tpu.memory_space<vmem>>, %arg3: memref<1x128xf32, #tpu.memory_space<vmem>>, %arg4: memref<128x128xf32, #tpu.memory_space<vmem>>, %arg5: memref<1x128xf32, #tpu.memory_space<vmem>>, %arg6: memref<128x128xf32, #tpu.memory_space<vmem>>, %arg7: memref<1x128xf32, #tpu.memory_space<vmem>>, %arg8: memref<8x128xf32, #tpu.memory_space<vmem>>) attributes {dimension_semantics = [#tpu.dimension_semantics<parallel>], iteration_bounds = array<i64: 1>, scalar_prefetch = 0 : i64, scratch_operands = 0 : i64, tpu.core_type = #tpu.core_type<tc>, window_params = [{transform_indices = @transform_0, window_bounds = array<i64: 8, 128>}, {pipeline_mode = #tpu.pipeline_mode<synchronous>, transform_indices = @transform_1, window_bounds = array<i64: 128, 128>}, {pipeline_mode = #tpu.pipeline_mode<synchronous>, transform_indices = @transform_2, window_bounds = array<i64: 1, 128>}, {pipeline_mode = #tpu.pipeline_mode<synchronous>, transform_indices = @transform_3, window_bounds = array<i64: 128, 128>}, {pipeline_mode = #tpu.pipeline_mode<synchronous>, transform_indices = @transform_4, window_bounds = array<i64: 1, 128>}, {pipeline_mode = #tpu.pipeline_mode<synchronous>, transform_indices = @transform_5, window_bounds = array<i64: 128, 128>}, {pipeline_mode = #tpu.pipeline_mode<synchronous>, transform_indices = @transform_6, window_bounds = array<i64: 1, 128>}, {transform_indices = @transform_7, window_bounds = array<i64: 8, 128>}]} {
    %c0 = arith.constant 0 : index
    %c0_0 = arith.constant 0 : index
    %0 = vector.load %arg1[%c0, %c0_0] : memref<8x128xf32, #tpu.memory_space<vmem>>, vector<8x128xf32>
    %c0_1 = arith.constant 0 : index
    %c0_2 = arith.constant 0 : index
    %1 = vector.load %arg2[%c0_1, %c0_2] : memref<128x128xf32, #tpu.memory_space<vmem>>, vector<128x128xf32>
    %c0_3 = arith.constant 0 : index
    %c0_4 = arith.constant 0 : index
    %2 = vector.load %arg3[%c0_3, %c0_4] : memref<1x128xf32, #tpu.memory_space<vmem>>, vector<1x128xf32>
    %cst = arith.constant dense<0.000000e+00> : vector<8x128xf32>
    %3 = tpu.matmul %0, %1, %cst {dimension_numbers = #tpu.dot_dimension_numbers<[1], [0], [0], [1], [0, 0, 1, 1], [], []>} : vector<8x128xf32>, vector<128x128xf32>, vector<8x128xf32> -> vector<8x128xf32>
    %4 = vector.broadcast %2 : vector<1x128xf32> to vector<8x128xf32>
    %5 = arith.addf %3, %4 : vector<8x128xf32>
    %cst_5 = arith.constant 0.000000e+00 : f32
    %6 = vector.broadcast %cst_5 : f32 to vector<8x128xf32>
    %7 = arith.maximumf %5, %6 : vector<8x128xf32>
    %c0_6 = arith.constant 0 : index
    %c0_7 = arith.constant 0 : index
    %8 = vector.load %arg4[%c0_6, %c0_7] : memref<128x128xf32, #tpu.memory_space<vmem>>, vector<128x128xf32>
    %c0_8 = arith.constant 0 : index
    %c0_9 = arith.constant 0 : index
    %9 = vector.load %arg5[%c0_8, %c0_9] : memref<1x128xf32, #tpu.memory_space<vmem>>, vector<1x128xf32>
    %cst_10 = arith.constant dense<0.000000e+00> : vector<8x128xf32>
    %10 = tpu.matmul %7, %8, %cst_10 {dimension_numbers = #tpu.dot_dimension_numbers<[1], [0], [0], [1], [0, 0, 1, 1], [], []>} : vector<8x128xf32>, vector<128x128xf32>, vector<8x128xf32> -> vector<8x128xf32>
    %11 = vector.broadcast %9 : vector<1x128xf32> to vector<8x128xf32>
    %12 = arith.addf %10, %11 : vector<8x128xf32>
    %13 = math.tanh %12 : vector<8x128xf32>
    %c0_11 = arith.constant 0 : index
    %c0_12 = arith.constant 0 : index
    %14 = vector.load %arg6[%c0_11, %c0_12] : memref<128x128xf32, #tpu.memory_space<vmem>>, vector<128x128xf32>
    %c0_13 = arith.constant 0 : index
    %c0_14 = arith.constant 0 : index
    %15 = vector.load %arg7[%c0_13, %c0_14] : memref<1x128xf32, #tpu.memory_space<vmem>>, vector<1x128xf32>
    %cst_15 = arith.constant dense<0.000000e+00> : vector<8x128xf32>
    %16 = tpu.matmul %13, %14, %cst_15 {dimension_numbers = #tpu.dot_dimension_numbers<[1], [0], [0], [1], [0, 0, 1, 1], [], []>} : vector<8x128xf32>, vector<128x128xf32>, vector<8x128xf32> -> vector<8x128xf32>
    %17 = vector.broadcast %15 : vector<1x128xf32> to vector<8x128xf32>
    %18 = arith.addf %16, %17 : vector<8x128xf32>
    %19 = arith.negf %18 : vector<8x128xf32>
    %20 = math.exp %19 : vector<8x128xf32>
    %cst_16 = arith.constant 1.000000e+00 : f32
    %21 = vector.broadcast %cst_16 : f32 to vector<8x128xf32>
    %22 = arith.addf %21, %20 : vector<8x128xf32>
    %23 = arith.divf %21, %22 : vector<8x128xf32>
    %c0_17 = arith.constant 0 : index
    %c0_18 = arith.constant 0 : index
    %24 = vector.load %arg8[%c0_17, %c0_18] : memref<8x128xf32, #tpu.memory_space<vmem>>, vector<8x128xf32>
    tpu.vector_store %arg8[%c0_17, %c0_18], %23 {strides = array<i32>} : memref<8x128xf32, #tpu.memory_space<vmem>>, vector<8x128xf32>,
    return
  }
  func.func @transform_0(%arg0: i32) -> (i32, i32) {
    %c0_i32 = arith.constant 0 : i32
    %c0_i32_0 = arith.constant 0 : i32
    return %arg0, %c0_i32 : i32, i32
  }
  func.func @transform_1(%arg0: i32) -> (i32, i32) {
    %c0_i32 = arith.constant 0 : i32
    %c0_i32_0 = arith.constant 0 : i32
    %c0_i32_1 = arith.constant 0 : i32
    return %c0_i32, %c0_i32_0 : i32, i32
  }
  func.func @transform_2(%arg0: i32) -> (i32, i32) {
    %c0_i32 = arith.constant 0 : i32
    %c0_i32_0 = arith.constant 0 : i32
    %c0_i32_1 = arith.constant 0 : i32
    return %c0_i32, %c0_i32_0 : i32, i32
  }
  func.func @transform_3(%arg0: i32) -> (i32, i32) {
    %c0_i32 = arith.constant 0 : i32
    %c0_i32_0 = arith.constant 0 : i32
    %c0_i32_1 = arith.constant 0 : i32
    return %c0_i32, %c0_i32_0 : i32, i32
  }
  func.func @transform_4(%arg0: i32) -> (i32, i32) {
    %c0_i32 = arith.constant 0 : i32
    %c0_i32_0 = arith.constant 0 : i32
    %c0_i32_1 = arith.constant 0 : i32
    return %c0_i32, %c0_i32_0 : i32, i32
  }
  func.func @transform_5(%arg0: i32) -> (i32, i32) {
    %c0_i32 = arith.constant 0 : i32
    %c0_i32_0 = arith.constant 0 : i32
    %c0_i32_1 = arith.constant 0 : i32
    return %c0_i32, %c0_i32_0 : i32, i32
  }
  func.func @transform_6(%arg0: i32) -> (i32, i32) {
    %c0_i32 = arith.constant 0 : i32
    %c0_i32_0 = arith.constant 0 : i32
    %c0_i32_1 = arith.constant 0 : i32
    return %c0_i32, %c0_i32_0 : i32, i32
  }
  func.func @transform_7(%arg0: i32) -> (i32, i32) {
    %c0_i32 = arith.constant 0 : i32
    %c0_i32_0 = arith.constant 0 : i32
    return %arg0, %c0_i32 : i32, i32
  }
}

</mosaic_0001>

<llo_original>
// kernel: mlp_apply.1
$region0: #{mlp_apply.1}
  #allocation0 [shape = 'u32[]', space=smem, size = 0x4, offset = 0x4, fixed_abs, tag = 'smem constant byte address 0x4 - core index']
  #allocation1 [shape = 'u32[72,128]{1,0:T(1,128)}', space=vmem, size = 0x9000, scoped, tag = 'internal scratch']
  %s0 = inlined_call_operand.vmem [shape: f32[8,128], index: 0, kind: input, shape index: {}]
  %s1 = inlined_call_operand.hbm [shape: f32[128,128], index: 1, kind: input, shape index: {}]
  %s2 = inlined_call_operand.vmem [shape: f32[1,128], index: 2, kind: input, shape index: {}]
  %s3 = inlined_call_operand.hbm [shape: f32[128,128], index: 3, kind: input, shape index: {}]
  %s4 = inlined_call_operand.vmem [shape: f32[1,128], index: 4, kind: input, shape index: {}]
  %s5 = inlined_call_operand.hbm [shape: f32[128,128], index: 5, kind: input, shape index: {}]
  %s6 = inlined_call_operand.vmem [shape: f32[1,128], index: 6, kind: input, shape index: {}]
  %s7 = inlined_call_operand.hbm [shape: f32[8,128], index: 7, kind: output, shape index: {}]
  %s8 = sld [smem:[#allocation0]]
  $region50: #{mlp_apply.1} parent=0
    _
  %s10 = ssub.s32 1, %s8
  %s11 = scalar_select 0, %s10, %s8
  $region1: #{mlp_apply.1} parent=0
    #allocation2 [shape = 'u8[65536]{0}', space=vmem, size = 0x10000, scoped, tag = 'input window, operand 1, single buffered']
    #allocation3 [shape = 's32[1]{0}', space=sflag, size = 0x4, scoped, tag = 'scoped memory for mlp_apply.1']
    #allocation4 [shape = 's32[1]{0}', space=sflag, size = 0x4, scoped, tag = 'scoped memory for mlp_apply.1']
    #allocation5 [shape = 'u8[65536]{0}', space=vmem, size = 0x10000, scoped, tag = 'input window, operand 3, single buffered']
    #allocation6 [shape = 's32[1]{0}', space=sflag, size = 0x4, scoped, tag = 'scoped memory for mlp_apply.1']
    #allocation7 [shape = 'u8[65536]{0}', space=vmem, size = 0x10000, scoped, tag = 'input window, operand 5, single buffered']
    #allocation8 [shape = 'u8[4096]{0}', space=vmem, size = 0x1000, scoped, tag = 'output window, operand 0, single buffered']
    %12 = vsyncpa [#allocation3], 0
    %13 = vsyncpa [#allocation6], 0
    %14 = vsyncpa [#allocation4], 0
    // Predicated region
    $region2: #{mlp_apply.1} parent=1 // pred_check
      _
    $region3: #{mlp_apply.1} parent=1 // pred_check_branch
      %16 = sbr.rel (0) target = $region5
    $region4: #{mlp_apply.1} parent=1 // pred_region
      _
    $region5: #{mlp_apply.1} parent=1 // pred_fallthru
      _
    // Predicated region
    $region6: #{mlp_apply.1} parent=1 // pred_check
      _
    $region7: #{mlp_apply.1} parent=1 // pred_check_branch
      %18 = sbr.rel (0) target = $region9
    $region8: #{mlp_apply.1} parent=1 // pred_region
      %20 = vsyncadd [#allocation3], 0
      %s21 = sshll.u32 %s1, 4
      %s22 = int_to_ptr.hbm [resolvable:$true] %s21
      %s23 = sshll.u32 [#allocation2], 4
      %s24 = int_to_ptr.vmem [resolvable:$true] %s23
      %29 = dma.hbm_to_vmem [thread:$0]  %s22, 2048, %s24, [#allocation3], 128, 128, 8
    $region9: #{mlp_apply.1} parent=1 // pred_fallthru
      _
    // Predicated region
    $region10: #{mlp_apply.1} parent=1 // pred_check
      _
    $region11: #{mlp_apply.1} parent=1 // pred_check_branch
      %31 = sbr.rel (0) target = $region13
    $region12: #{mlp_apply.1} parent=1 // pred_region
      _
    $region13: #{mlp_apply.1} parent=1 // pred_fallthru
      _
    // Predicated region
    $region14: #{mlp_apply.1} parent=1 // pred_check
      _
    $region15: #{mlp_apply.1} parent=1 // pred_check_branch
      %33 = sbr.rel (0) target = $region17
    $region16: #{mlp_apply.1} parent=1 // pred_region
      %35 = vsyncadd [#allocation6], 0
      %s36 = sshll.u32 %s3, 4
      %s37 = int_to_ptr.hbm [resolvable:$true] %s36
      %s38 = sshll.u32 [#allocation5], 4
      %s39 = int_to_ptr.vmem [resolvable:$true] %s38
      %44 = dma.hbm_to_vmem [thread:$0]  %s37, 2048, %s39, [#allocation6], 128, 128, 8
    $region17: #{mlp_apply.1} parent=1 // pred_fallthru
      _
    // Predicated region
    $region18: #{mlp_apply.1} parent=1 // pred_check
      _
    $region19: #{mlp_apply.1} parent=1 // pred_check_branch
      %46 = sbr.rel (0) target = $region21
    $region20: #{mlp_apply.1} parent=1 // pred_region
      _
    $region21: #{mlp_apply.1} parent=1 // pred_fallthru
      _
    // Predicated region
    $region22: #{mlp_apply.1} parent=1 // pred_check
      _
    $region23: #{mlp_apply.1} parent=1 // pred_check_branch
      %48 = sbr.rel (0) target = $region25
    $region24: #{mlp_apply.1} parent=1 // pred_region
      %50 = vsyncadd [#allocation6], 0
      %s51 = sshll.u32 %s5, 4
      %s52 = int_to_ptr.hbm [resolvable:$true] %s51
      %s53 = sshll.u32 [#allocation7], 4
      %s54 = int_to_ptr.vmem [resolvable:$true] %s53
      %59 = dma.hbm_to_vmem [thread:$0]  %s52, 2048, %s54, [#allocation6], 128, 128, 8
    $region25: #{mlp_apply.1} parent=1 // pred_fallthru
      _
    // Predicated region
    $region26: #{mlp_apply.1} parent=1 // pred_check
      _
    $region27: #{mlp_apply.1} parent=1 // pred_check_branch
      %61 = sbr.rel (0) target = $region29
    $region28: #{mlp_apply.1} parent=1 // pred_region
      _
    $region29: #{mlp_apply.1} parent=1 // pred_fallthru
      _
    // Predicated region
    $region30: #{mlp_apply.1} parent=1 // pred_check
      _
    $region31: #{mlp_apply.1} parent=1 // pred_check_branch
      %63 = sbr.rel (0) target = $region33
    $region32: #{mlp_apply.1} parent=1 // pred_region
      %65 = dma.done [#allocation3], 2048
    $region33: #{mlp_apply.1} parent=1 // pred_fallthru
      _
    // Predicated region
    $region34: #{mlp_apply.1} parent=1 // pred_check
      _
    $region35: #{mlp_apply.1} parent=1 // pred_check_branch
      %67 = sbr.rel (0) target = $region37
    $region36: #{mlp_apply.1} parent=1 // pred_region
      %69 = dma.done [#allocation6], 2048
    $region37: #{mlp_apply.1} parent=1 // pred_fallthru
      _
    // Predicated region
    $region38: #{mlp_apply.1} parent=1 // pred_check
      _
    $region39: #{mlp_apply.1} parent=1 // pred_check_branch
      %71 = sbr.rel (0) target = $region41
    $region40: #{mlp_apply.1} parent=1 // pred_region
      %73 = dma.done [#allocation6], 2048
    $region41: #{mlp_apply.1} parent=1 // pred_fallthru
      _
    %v74 = vld [vmem:[%s0] sm:$0xff]
    %v75 = vld [vmem:[#allocation2] sm:$0xff]
    %v76 = vld [vmem:[#allocation2 + $0x8] sm:$0xff]
    %v77 = vld [vmem:[#allocation2 + $0x10] sm:$0xff]
    %v78 = vld [vmem:[#allocation2 + $0x18] sm:$0xff]
    %v79 = vld [vmem:[#allocation2 + $0x20] sm:$0xff]
    %v80 = vld [vmem:[#allocation2 + $0x28] sm:$0xff]
    %v81 = vld [vmem:[#allocation2 + $0x30] sm:$0xff]
    %v82 = vld [vmem:[#allocation2 + $0x38] sm:$0xff]
    %v83 = vld [vmem:[#allocation2 + $0x40] sm:$0xff]
    %v84 = vld [vmem:[#allocation2 + $0x48] sm:$0xff]
    %v85 = vld [vmem:[#allocation2 + $0x50] sm:$0xff]
    %v86 = vld [vmem:[#allocation2 + $0x58] sm:$0xff]
    %v87 = vld [vmem:[#allocation2 + $0x60] sm:$0xff]
    %v88 = vld [vmem:[#allocation2 + $0x68] sm:$0xff]
    %v89 = vld [vmem:[#allocation2 + $0x70] sm:$0xff]
    %v90 = vld [vmem:[#allocation2 + $0x78] sm:$0xff]
    %v91 = vld [vmem:[%s2] sm:$0x1]
    %v93 = vperm.slane %v91, 0
    %95 = vmatpush.msra.mxu0 %v90
    %96 = vmatpush.msra.mxu0 %v89
    %97 = vmatpush.msra.mxu0 %v88
    %98 = vmatpush.msra.mxu0 %v87
    %99 = vmatpush.msra.mxu0 %v86
    %100 = vmatpush.msra.mxu0 %v85
    %101 = vmatpush.msra.mxu0 %v84
    %102 = vmatpush.msra.mxu0 %v83
    %103 = vmatpush.msra.mxu0 %v82
    %104 = vmatpush.msra.mxu0 %v81
    %105 = vmatpush.msra.mxu0 %v80
    %106 = vmatpush.msra.mxu0 %v79
    %107 = vmatpush.msra.mxu0 %v78
    %108 = vmatpush.msra.mxu0 %v77
    %109 = vmatpush.msra.mxu0 %v76
    %110 = vmatpush.msra.mxu0 %v75
    %111 = vmatmul.f32.gmra.mxu0 %v74
    %v112 = vpop.f32.mrf.mxu0
    %v113 = vadd.f32 %v93, %v112
    %114 = vdwg.mxu0
    %v115 = vmax.f32 %v113, 0.0
    %v116 = vld [vmem:[#allocation5] sm:$0xff]
    %v117 = vld [vmem:[#allocation5 + $0x8] sm:$0xff]
    %v118 = vld [vmem:[#allocation5 + $0x10] sm:$0xff]
    %v119 = vld [vmem:[#allocation5 + $0x18] sm:$0xff]
    %v120 = vld [vmem:[#allocation5 + $0x20] sm:$0xff]
    %v121 = vld [vmem:[#allocation5 + $0x28] sm:$0xff]
    %v122 = vld [vmem:[#allocation5 + $0x30] sm:$0xff]
    %v123 = vld [vmem:[#allocation5 + $0x38] sm:$0xff]
    %v124 = vld [vmem:[#allocation5 + $0x40] sm:$0xff]
    %v125 = vld [vmem:[#allocation5 + $0x48] sm:$0xff]
    %v126 = vld [vmem:[#allocation5 + $0x50] sm:$0xff]
    %v127 = vld [vmem:[#allocation5 + $0x58] sm:$0xff]
    %v128 = vld [vmem:[#allocation5 + $0x60] sm:$0xff]
    %v129 = vld [vmem:[#allocation5 + $0x68] sm:$0xff]
    %v130 = vld [vmem:[#allocation5 + $0x70] sm:$0xff]
    %v131 = vld [vmem:[#allocation5 + $0x78] sm:$0xff]
    %v132 = vld [vmem:[%s4] sm:$0x1]
    %v134 = vperm.slane %v132, 0
    %136 = vmatpush.msra.mxu0 %v131
    %137 = vmatpush.msra.mxu0 %v130
    %138 = vmatpush.msra.mxu0 %v129
    %139 = vmatpush.msra.mxu0 %v128
    %140 = vmatpush.msra.mxu0 %v127
    %141 = vmatpush.msra.mxu0 %v126
    %142 = vmatpush.msra.mxu0 %v125
    %143 = vmatpush.msra.mxu0 %v124
    %144 = vmatpush.msra.mxu0 %v123
    %145 = vmatpush.msra.mxu0 %v122
    %146 = vmatpush.msra.mxu0 %v121
    %147 = vmatpush.msra.mxu0 %v120
    %148 = vmatpush.msra.mxu0 %v119
    %149 = vmatpush.msra.mxu0 %v118
    %150 = vmatpush.msra.mxu0 %v117
    %151 = vmatpush.msra.mxu0 %v116
    %152 = vmatmul.f32.gmra.mxu0 %v115
    %v153 = vpop.f32.mrf.mxu0
    %v154 = vadd.f32 %v134, %v153
    %155 = vdwg.mxu0
    %v156 = vtanh.pop %v154
    %v157 = vld [vmem:[#allocation7] sm:$0xff]
    %v158 = vld [vmem:[#allocation7 + $0x8] sm:$0xff]
    %v159 = vld [vmem:[#allocation7 + $0x10] sm:$0xff]
    %v160 = vld [vmem:[#allocation7 + $0x18] sm:$0xff]
    %v161 = vld [vmem:[#allocation7 + $0x20] sm:$0xff]
    %v162 = vld [vmem:[#allocation7 + $0x28] sm:$0xff]
    %v163 = vld [vmem:[#allocation7 + $0x30] sm:$0xff]
    %v164 = vld [vmem:[#allocation7 + $0x38] sm:$0xff]
    %v165 = vld [vmem:[#allocation7 + $0x40] sm:$0xff]
    %v166 = vld [vmem:[#allocation7 + $0x48] sm:$0xff]
    %v167 = vld [vmem:[#allocation7 + $0x50] sm:$0xff]
    %v168 = vld [vmem:[#allocation7 + $0x58] sm:$0xff]
    %v169 = vld [vmem:[#allocation7 + $0x60] sm:$0xff]
    %v170 = vld [vmem:[#allocation7 + $0x68] sm:$0xff]
    %v171 = vld [vmem:[#allocation7 + $0x70] sm:$0xff]
    %v172 = vld [vmem:[#allocation7 + $0x78] sm:$0xff]
    %v173 = vld [vmem:[%s6] sm:$0x1]
    %v175 = vperm.slane %v173, 0
    %177 = vmatpush.msra.mxu0 %v172
    %178 = vmatpush.msra.mxu0 %v171
    %179 = vmatpush.msra.mxu0 %v170
    %180 = vmatpush.msra.mxu0 %v169
    %181 = vmatpush.msra.mxu0 %v168
    %182 = vmatpush.msra.mxu0 %v167
    %183 = vmatpush.msra.mxu0 %v166
    %184 = vmatpush.msra.mxu0 %v165
    %185 = vmatpush.msra.mxu0 %v164
    %186 = vmatpush.msra.mxu0 %v163
    %187 = vmatpush.msra.mxu0 %v162
    %188 = vmatpush.msra.mxu0 %v161
    %189 = vmatpush.msra.mxu0 %v160
    %190 = vmatpush.msra.mxu0 %v159
    %191 = vmatpush.msra.mxu0 %v158
    %192 = vmatpush.msra.mxu0 %v157
    %193 = vmatmul.f32.gmra.mxu0 %v156
    %v194 = vpop.f32.mrf.mxu0
    %v195 = vadd.f32 %v175, %v194
    %196 = vdwg.mxu0
    %v197 = vxor.u32 %v195, 2147483648
    %v198 = vmul.f32 %v197, 1.442695
    %v199 = vpow.pop %v198
    %v200 = vadd.f32 %v199, 1.0
    %v201 = vrcp.pop %v200
    %v202 = vmul.f32 %v200, %v201
    %v203 = vsub.f32 1.0, %v202
    %v204 = vmul.f32 %v201, %v203
    %v205 = vadd.f32 %v201, %v204
    %vm206 = vweird.f32 %v200
    %vm207 = vweird.f32 %v201
    %vm208 = vmor %vm206, %vm207
    %v209 = vsel %vm208, %v201, %v205
    %v210 = vand.u32 2147483647, %v200
    %vm211 = vcmp.eq.f32.partialorder %v210, 8.507059e+37
    %v212 = vand.u32 %v200, 2147483648
    %v213 = vor.u32 1.1754944e-38, %v212
    %v214 = vsel %vm211, %v213, %v209
    %v215 = vmul.f32 1.0, %v214
    %216 = vst [vmem:[#allocation8] sm:$0xff] %v215
    // Predicated region
    $region42: #{mlp_apply.1} parent=1 // pred_check
      _
    $region43: #{mlp_apply.1} parent=1 // pred_check_branch
      %218 = sbr.rel (0) target = $region45
    $region44: #{mlp_apply.1} parent=1 // pred_region
      %220 = vsyncadd [#allocation4], 0
      %s222 = sshll.u32 [#allocation8], 4
      %s223 = int_to_ptr.vmem [resolvable:$true] %s222
      %s224 = sshll.u32 %s7, 4
      %s225 = int_to_ptr.hbm [resolvable:$true] %s224
      %227 = dma.vmem_to_hbm [thread:$0]  %s223, 128, %s225, [#allocation4]
    $region45: #{mlp_apply.1} parent=1 // pred_fallthru
      _
    // Predicated region
    $region46: #{mlp_apply.1} parent=1 // pred_check
      _
    $region47: #{mlp_apply.1} parent=1 // pred_check_branch
      %229 = sbr.rel (0) target = $region49
    $region48: #{mlp_apply.1} parent=1 // pred_region
      %231 = dma.done [#allocation4], 128
    $region49: #{mlp_apply.1} parent=1 // pred_fallthru
      _
    %232 = vsyncpa [#allocation3], 1
    %233 = vsyncpa [#allocation6], 1
    %234 = vsyncpa [#allocation4], 1

</llo_original>
